<compile_context>
chip_gen: v6e
topology: v6e:2x2x1
jax: 0.10.0
libtpu: 0.0.40
codegen_flags: <defaults>
</compile_context>

<pallas_src>
import functools

import jax
import jax.numpy as jnp
from jax import lax
from jax.experimental import pallas as pl
from jax.experimental.pallas import tpu as pltpu


def _round_up(x, m):
    return ((x + m - 1) // m) * m


def _default_bf16_epilogue():
    # v6e / v7x have a bf16-native VPU -> run the bias+relu epilogues in bf16.
    # v5e (and older) have no bf16 VPU/EUP path -> keep elementwise math in f32
    # and use bf16 only as the MXU operand dtype.
    try:
        kind = jax.devices()[0].device_kind.lower()
    except Exception:
        return True
    return not any(tag in kind for tag in ("v2", "v3", "v4", "v5"))


def _mlp_kernel(x_ref, w1_ref, b1_ref, w2_ref, b2_ref, w3_ref, b3_ref, o_ref,
                *, bf16_epilogue):
    # x_ref: (TILE_B, n_inputs) f32 in natural (batch-major) layout.
    # Every matmul result is (feat, TILE_B): batch stays on the 128-lane axis,
    # so all intermediates and the output tile are lane-dense.
    ew = jnp.bfloat16 if bf16_epilogue else jnp.float32

    x = x_ref[...].astype(jnp.bfloat16)

    # fc1 (+ bias + relu): contract the LAST axes of (hidden, n_in) x
    # (TILE_B, n_in); Mosaic does the small in-VMEM transpose on the XLU and
    # the MXU accumulates in f32 into a lane-dense (hidden, TILE_B) tile.
    h1 = lax.dot_general(
        w1_ref[...], x,
        dimension_numbers=(((1,), (1,)), ((), ())),
        preferred_element_type=jnp.float32)
    h1 = jnp.maximum(h1.astype(ew) + b1_ref[...], 0).astype(jnp.bfloat16)

    # fc2 (+ bias + relu). Dropout is identity in eval mode.
    h2 = jnp.dot(w2_ref[...], h1, preferred_element_type=jnp.float32)
    h2 = jnp.maximum(h2.astype(ew) + b2_ref[...], 0)

    # fc3 has a single output feature: broadcast-multiply + sublane reduce
    # (VPU/XLU, f32 accumulation) instead of a 1-row MXU matmul.
    # TODO(synk): if a bundle profile shows VALU/XLU as the binding slot, move
    # this to the (mostly idle) MXU via lax.dot_general(w3, h2).
    z3 = jnp.sum((h2 * w3_ref[...]).astype(jnp.float32), axis=0, keepdims=True)
    z3 = z3 + b3_ref[...]

    # sigmoid = 1 / (1 + exp(-z)): exp and approx reciprocal both go to the EUP.
    o_ref[...] = pl.reciprocal(1.0 + jnp.exp(-z3), approx=True).astype(o_ref.dtype)


def net_forward(x, params, *, tile_b_max=8192, bf16_epilogue=None):
    """Fused Pallas forward pass for `Net` (eval mode: dropout = identity).

    x:      (B, n_inputs) float32
    params: PyTorch-native layout:
        w1 (32, n_inputs), b1 (32,), w2 (32, 32), b2 (32,), w3 (1, 32), b3 (1,)
    returns (B, 1) float32
    """
    w1, b1, w2, b2, w3, b3 = params
    B, n_inputs = x.shape
    hidden = w1.shape[0]

    if bf16_epilogue is None:
        bf16_epilogue = _default_bf16_epilogue()
    ew = jnp.bfloat16 if bf16_epilogue else jnp.float32

    # Batch sits on the 128-lane axis of the result; pad B up to a lane
    # multiple only when needed (no-op / skipped for the common B % 128 == 0
    # case, and it fuses under jit otherwise). No transpose, no dtype prologue.
    b_pad = _round_up(B, 128)
    if b_pad != B:
        x = jnp.pad(x, ((0, b_pad - B), (0, 0)))
    tile_b = min(_round_up(tile_b_max, 128), b_pad)
    grid = (pl.cdiv(b_pad, tile_b),)

    # Weights in bf16 for the MXU; biases / fc3 column in the epilogue dtype
    # (bf16 on v6e/v7x, f32 on v5e); accumulation is f32 everywhere.
    w1b = w1.astype(jnp.bfloat16)
    w2b = w2.astype(jnp.bfloat16)
    b1c = b1.reshape(hidden, 1).astype(ew)
    b2c = b2.reshape(hidden, 1).astype(ew)
    w3c = w3.reshape(hidden, 1).astype(ew)        # (1, 32) -> (32, 1) column
    b3c = b3.reshape(1, 1).astype(jnp.float32)

    flops = 2 * b_pad * (n_inputs * hidden + hidden * hidden + hidden)
    bytes_accessed = (
        b_pad * n_inputs * 4 + b_pad * 4
        + (w1b.size + w2b.size) * 2
        + (b1c.size + b2c.size + w3c.size) * b1c.dtype.itemsize
        + b3c.size * 4)

    out_t = pl.pallas_call(
        functools.partial(_mlp_kernel, bf16_epilogue=bf16_epilogue),
        out_shape=jax.ShapeDtypeStruct((1, b_pad), jnp.float32),
        grid=grid,
        in_specs=[
            # x: streamed / double-buffered, natural layout (no wrapper pass).
            pl.BlockSpec((tile_b, n_inputs), lambda i: (i, 0)),
            # The six tiny operands stay VMEM-resident across grid steps.
            pl.BlockSpec((hidden, n_inputs), lambda i: (0, 0)),   # w1
            pl.BlockSpec((hidden, 1), lambda i: (0, 0)),          # b1
            pl.BlockSpec((hidden, hidden), lambda i: (0, 0)),     # w2
            pl.BlockSpec((hidden, 1), lambda i: (0, 0)),          # b2
            pl.BlockSpec((hidden, 1), lambda i: (0, 0)),          # w3 column
            pl.BlockSpec((1, 1), lambda i: (0, 0)),               # b3
        ],
        out_specs=pl.BlockSpec((1, tile_b), lambda i: (0, i)),
        compiler_params=pltpu.CompilerParams(
            dimension_semantics=("parallel",),   # shard grid over 2 TCs on v7x
            # ~10-15 MiB resident at TILE_B=8192 -> 32 MiB is ample on all gens;
            # bump if tile_b_max is pushed well past ~16K.
            vmem_limit_bytes=32 * 1024 * 1024,
        ),
        cost_estimate=pl.CostEstimate(
            flops=flops, transcendentals=2 * b_pad, bytes_accessed=bytes_accessed),
    )(x, w1b, b1c, w2b, b2c, w3c, b3c)

    # (1, B_pad) lane-dense result -> (B, 1) like the PyTorch module.
    return out_t[0, :B].reshape(B, 1)


def init_params(key, n_inputs, hidden=32):
    """Deterministic init mirroring nn.Linear's native (out, in) layout."""
    ks = jax.random.split(key, 6)

    def lin(kw, kb, fan_in, fan_out):
        bound = 1.0 / jnp.sqrt(fan_in)
        w = jax.random.uniform(kw, (fan_out, fan_in), jnp.float32, -bound, bound)
        b = jax.random.uniform(kb, (fan_out,), jnp.float32, -bound, bound)
        return w, b

    w1, b1 = lin(ks[0], ks[1], n_inputs, hidden)
    w2, b2 = lin(ks[2], ks[3], hidden, hidden)
    w3, b3 = lin(ks[4], ks[5], hidden, 1)
    return (w1, b1, w2, b2, w3, b3)


if __name__ == "__main__":
    key = jax.random.PRNGKey(0)
    k_x, k_p = jax.random.split(key)

    B, n_inputs = 8, 16
    x = jax.random.normal(k_x, (B, n_inputs), dtype=jnp.float32)
    params = init_params(k_p, n_inputs)

    # jit so the (optional) pad prologue and slice epilogue fuse around the
    # pallas_call instead of running as separate XLA executables.
    fwd = jax.jit(net_forward, static_argnames=("tile_b_max", "bf16_epilogue"))

    out = fwd(x, params)
    jax.block_until_ready(out)

    # Pure-JAX f32 reference (PyTorch semantics: x @ W.T + b per layer).
    w1, b1, w2, b2, w3, b3 = params
    h1 = jnp.maximum(x @ w1.T + b1, 0.0)
    h2 = jnp.maximum(h1 @ w2.T + b2, 0.0)
    ref = jax.nn.sigmoid(h2 @ w3.T + b3)

    assert out.shape == (B, 1)
    # bf16 MXU operands (+ bf16 epilogue on v6e/v7x, approx reciprocal) -> small tol.
    assert jnp.allclose(out, ref, atol=2e-2), "mismatch vs reference"

    print("KERNEL_OK")
</pallas_src>

<mosaic_0001>
module attributes {stable_mosaic.version = 11 : i64} {
  func.func @_mlp_kernel(%arg0: i32, %arg1: memref<128x16xf32, #tpu.memory_space<vmem>>, %arg2: memref<32x16xbf16, #tpu.memory_space<vmem>>, %arg3: memref<32x1xbf16, #tpu.memory_space<vmem>>, %arg4: memref<32x32xbf16, #tpu.memory_space<vmem>>, %arg5: memref<32x1xbf16, #tpu.memory_space<vmem>>, %arg6: memref<32x1xbf16, #tpu.memory_space<vmem>>, %arg7: memref<1x1xf32, #tpu.memory_space<vmem>>, %arg8: memref<1x128xf32, #tpu.memory_space<vmem>>) attributes {dimension_semantics = [#tpu.dimension_semantics<parallel>], iteration_bounds = array<i64: 1>, scalar_prefetch = 0 : i64, scratch_operands = 0 : i64, tpu.core_type = #tpu.core_type<tc>, window_params = [{transform_indices = @transform_0, window_bounds = array<i64: 128, 16>}, {pipeline_mode = #tpu.pipeline_mode<synchronous>, transform_indices = @transform_1, window_bounds = array<i64: 32, 16>}, {pipeline_mode = #tpu.pipeline_mode<synchronous>, transform_indices = @transform_2, window_bounds = array<i64: 32, 1>}, {pipeline_mode = #tpu.pipeline_mode<synchronous>, transform_indices = @transform_3, window_bounds = array<i64: 32, 32>}, {pipeline_mode = #tpu.pipeline_mode<synchronous>, transform_indices = @transform_4, window_bounds = array<i64: 32, 1>}, {pipeline_mode = #tpu.pipeline_mode<synchronous>, transform_indices = @transform_5, window_bounds = array<i64: 32, 1>}, {pipeline_mode = #tpu.pipeline_mode<synchronous>, transform_indices = @transform_6, window_bounds = array<i64: 1, 1>}, {transform_indices = @transform_7, window_bounds = array<i64: 1, 128>}]} {
    %c0 = arith.constant 0 : index
    %c0_0 = arith.constant 0 : index
    %0 = vector.load %arg1[%c0, %c0_0] : memref<128x16xf32, #tpu.memory_space<vmem>>, vector<128x16xf32>
    %1 = arith.truncf %0 : vector<128x16xf32> to vector<128x16xbf16>
    %c0_1 = arith.constant 0 : index
    %c0_2 = arith.constant 0 : index
    %2 = vector.load %arg2[%c0_1, %c0_2] : memref<32x16xbf16, #tpu.memory_space<vmem>>, vector<32x16xbf16>
    %cst = arith.constant dense<0.000000e+00> : vector<32x128xf32>
    %3 = tpu.matmul %2, %1, %cst {dimension_numbers = #tpu.dot_dimension_numbers<[1], [1], [0], [0], [0, 0, 1, 0], [], []>} : vector<32x16xbf16>, vector<128x16xbf16>, vector<32x128xf32> -> vector<32x128xf32>
    %4 = arith.truncf %3 : vector<32x128xf32> to vector<32x128xbf16>
    %c0_3 = arith.constant 0 : index
    %c0_4 = arith.constant 0 : index
    %5 = vector.load %arg3[%c0_3, %c0_4] : memref<32x1xbf16, #tpu.memory_space<vmem>>, vector<32x1xbf16>
    %6 = vector.broadcast %5 : vector<32x1xbf16> to vector<32x128xbf16>
    %7 = arith.addf %4, %6 : vector<32x128xbf16>
    %cst_5 = arith.constant 0.000000e+00 : bf16
    %8 = vector.broadcast %cst_5 : bf16 to vector<32x128xbf16>
    %9 = arith.maximumf %7, %8 : vector<32x128xbf16>
    %c0_6 = arith.constant 0 : index
    %c0_7 = arith.constant 0 : index
    %10 = vector.load %arg4[%c0_6, %c0_7] : memref<32x32xbf16, #tpu.memory_space<vmem>>, vector<32x32xbf16>
    %cst_8 = arith.constant dense<0.000000e+00> : vector<32x128xf32>
    %11 = tpu.matmul %10, %9, %cst_8 {dimension_numbers = #tpu.dot_dimension_numbers<[1], [0], [0], [1], [0, 0, 1, 1], [], []>} : vector<32x32xbf16>, vector<32x128xbf16>, vector<32x128xf32> -> vector<32x128xf32>
    %12 = arith.truncf %11 : vector<32x128xf32> to vector<32x128xbf16>
    %c0_9 = arith.constant 0 : index
    %c0_10 = arith.constant 0 : index
    %13 = vector.load %arg5[%c0_9, %c0_10] : memref<32x1xbf16, #tpu.memory_space<vmem>>, vector<32x1xbf16>
    %14 = vector.broadcast %13 : vector<32x1xbf16> to vector<32x128xbf16>
    %15 = arith.addf %12, %14 : vector<32x128xbf16>
    %cst_11 = arith.constant 0.000000e+00 : bf16
    %16 = vector.broadcast %cst_11 : bf16 to vector<32x128xbf16>
    %17 = arith.maximumf %15, %16 : vector<32x128xbf16>
    %c0_12 = arith.constant 0 : index
    %c0_13 = arith.constant 0 : index
    %18 = vector.load %arg6[%c0_12, %c0_13] : memref<32x1xbf16, #tpu.memory_space<vmem>>, vector<32x1xbf16>
    %19 = vector.broadcast %18 : vector<32x1xbf16> to vector<32x128xbf16>
    %20 = arith.mulf %17, %19 : vector<32x128xbf16>
    %21 = arith.extf %20 : vector<32x128xbf16> to vector<32x128xf32>
    %cst_14 = arith.constant dense<0.000000e+00> : vector<128xf32>
    %22 = vector.multi_reduction <add>, %21, %cst_14 [0] : vector<32x128xf32> to vector<128xf32>
    %23 = vector.shape_cast %22 : vector<128xf32> to vector<1x128xf32>
    %c0_15 = arith.constant 0 : index
    %c0_16 = arith.constant 0 : index
    %24 = vector.load %arg7[%c0_15, %c0_16] : memref<1x1xf32, #tpu.memory_space<vmem>>, vector<1x1xf32>
    %25 = vector.broadcast %24 : vector<1x1xf32> to vector<1x128xf32>
    %26 = arith.addf %23, %25 : vector<1x128xf32>
    %cst_17 = arith.constant 0.000000e+00 : f32
    %27 = vector.broadcast %cst_17 : f32 to vector<1x128xf32>
    %28 = arith.subf %27, %26 : vector<1x128xf32>
    %29 = math.exp %28 : vector<1x128xf32>
    %cst_18 = arith.constant 1.000000e+00 : f32
    %30 = vector.broadcast %cst_18 : f32 to vector<1x128xf32>
    %31 = arith.addf %30, %29 : vector<1x128xf32>
    %32 = tpu.reciprocal %31 {approx = true} : vector<1x128xf32> -> vector<1x128xf32>
    %c0_19 = arith.constant 0 : index
    %c0_20 = arith.constant 0 : index
    %33 = vector.load %arg8[%c0_19, %c0_20] : memref<1x128xf32, #tpu.memory_space<vmem>>, vector<1x128xf32>
    tpu.vector_store %arg8[%c0_19, %c0_20], %32 {strides = array<i32>} : memref<1x128xf32, #tpu.memory_space<vmem>>, vector<1x128xf32>,
    return
  }
  func.func @transform_0(%arg0: i32) -> (i32, i32) {
    %c0_i32 = arith.constant 0 : i32
    %c0_i32_0 = arith.constant 0 : i32
    return %arg0, %c0_i32 : i32, i32
  }
  func.func @transform_1(%arg0: i32) -> (i32, i32) {
    %c0_i32 = arith.constant 0 : i32
    %c0_i32_0 = arith.constant 0 : i32
    %c0_i32_1 = arith.constant 0 : i32
    return %c0_i32, %c0_i32_0 : i32, i32
  }
  func.func @transform_2(%arg0: i32) -> (i32, i32) {
    %c0_i32 = arith.constant 0 : i32
    %c0_i32_0 = arith.constant 0 : i32
    %c0_i32_1 = arith.constant 0 : i32
    return %c0_i32, %c0_i32_0 : i32, i32
  }
  func.func @transform_3(%arg0: i32) -> (i32, i32) {
    %c0_i32 = arith.constant 0 : i32
    %c0_i32_0 = arith.constant 0 : i32
    %c0_i32_1 = arith.constant 0 : i32
    return %c0_i32, %c0_i32_0 : i32, i32
  }
  func.func @transform_4(%arg0: i32) -> (i32, i32) {
    %c0_i32 = arith.constant 0 : i32
    %c0_i32_0 = arith.constant 0 : i32
    %c0_i32_1 = arith.constant 0 : i32
    return %c0_i32, %c0_i32_0 : i32, i32
  }
  func.func @transform_5(%arg0: i32) -> (i32, i32) {
    %c0_i32 = arith.constant 0 : i32
    %c0_i32_0 = arith.constant 0 : i32
    %c0_i32_1 = arith.constant 0 : i32
    return %c0_i32, %c0_i32_0 : i32, i32
  }
  func.func @transform_6(%arg0: i32) -> (i32, i32) {
    %c0_i32 = arith.constant 0 : i32
    %c0_i32_0 = arith.constant 0 : i32
    %c0_i32_1 = arith.constant 0 : i32
    return %c0_i32, %c0_i32_0 : i32, i32
  }
  func.func @transform_7(%arg0: i32) -> (i32, i32) {
    %c0_i32 = arith.constant 0 : i32
    %c0_i32_0 = arith.constant 0 : i32
    return %c0_i32, %arg0 : i32, i32
  }
}

</mosaic_0001>

<llo_original>
// kernel: net_forward.1
$region0: #{net_forward.1}
  #allocation0 [shape = 'u32[]', space=smem, size = 0x4, offset = 0x4, fixed_abs, tag = 'smem constant byte address 0x4 - core index']
  #allocation1 [shape = 'u32[144,128]{1,0:T(1,128)}', space=vmem, size = 0x12000, scoped, tag = 'internal scratch']
  #allocation2 [shape = 'f32[1,1]{1,0:T(1,128)S(1)}', space=vmem, size = 0x200, scoped, tag = 'scoped memory for net_forward.1']
  %s0 = inlined_call_operand.vmem [shape: f32[128,16], index: 0, kind: input, shape index: {}]
  %s1 = inlined_call_operand.vmem [shape: bf16[32,16], index: 1, kind: input, shape index: {}]
  %s2 = inlined_call_operand.vmem [shape: bf16[32,1], index: 2, kind: input, shape index: {}]
  %s3 = inlined_call_operand.vmem [shape: bf16[32,32], index: 3, kind: input, shape index: {}]
  %s4 = inlined_call_operand.vmem [shape: bf16[32,1], index: 4, kind: input, shape index: {}]
  %s5 = inlined_call_operand.vmem [shape: bf16[32,1], index: 5, kind: input, shape index: {}]
  %s6 = inlined_call_operand.<no memory space> [shape: f32[1,1], index: 6, kind: input, shape index: {}]
  %s7 = inlined_call_operand.vmem [shape: f32[1,128], index: 7, kind: output, shape index: {}]
  %s8 = sld [smem:[#allocation0]]
  $region38: #{net_forward.1} parent=0
    _
  %s10 = ssub.s32 1, %s8
  %s11 = scalar_select 0, %s10, %s8
  %v12 = vstv %s6
  %13 = vst [vmem:[#allocation2] sm:$0x1] %v12
  // Predicated region
  $region2: #{net_forward.1} parent=0 // pred_check
    _
  $region3: #{net_forward.1} parent=0 // pred_check_branch
    %15 = sbr.rel (0) target = $region5
  $region4: #{net_forward.1} parent=0 // pred_region
    _
  $region5: #{net_forward.1} parent=0 // pred_fallthru
    _
  // Predicated region
  $region6: #{net_forward.1} parent=0 // pred_check
    _
  $region7: #{net_forward.1} parent=0 // pred_check_branch
    %17 = sbr.rel (0) target = $region9
  $region8: #{net_forward.1} parent=0 // pred_region
    _
  $region9: #{net_forward.1} parent=0 // pred_fallthru
    _
  // Predicated region
  $region10: #{net_forward.1} parent=0 // pred_check
    _
  $region11: #{net_forward.1} parent=0 // pred_check_branch
    %19 = sbr.rel (0) target = $region13
  $region12: #{net_forward.1} parent=0 // pred_region
    _
  $region13: #{net_forward.1} parent=0 // pred_fallthru
    _
  // Predicated region
  $region14: #{net_forward.1} parent=0 // pred_check
    _
  $region15: #{net_forward.1} parent=0 // pred_check_branch
    %21 = sbr.rel (0) target = $region17
  $region16: #{net_forward.1} parent=0 // pred_region
    _
  $region17: #{net_forward.1} parent=0 // pred_fallthru
    _
  // Predicated region
  $region18: #{net_forward.1} parent=0 // pred_check
    _
  $region19: #{net_forward.1} parent=0 // pred_check_branch
    %23 = sbr.rel (0) target = $region21
  $region20: #{net_forward.1} parent=0 // pred_region
    _
  $region21: #{net_forward.1} parent=0 // pred_fallthru
    _
  // Predicated region
  $region22: #{net_forward.1} parent=0 // pred_check
    _
  $region23: #{net_forward.1} parent=0 // pred_check_branch
    %25 = sbr.rel (0) target = $region25
  $region24: #{net_forward.1} parent=0 // pred_region
    _
  $region25: #{net_forward.1} parent=0 // pred_fallthru
    _
  // Predicated region
  $region26: #{net_forward.1} parent=0 // pred_check
    _
  $region27: #{net_forward.1} parent=0 // pred_check_branch
    %27 = sbr.rel (0) target = $region29
  $region28: #{net_forward.1} parent=0 // pred_region
    _
  $region29: #{net_forward.1} parent=0 // pred_fallthru
    _
  %v29 = vld [vmem:[%s0] sm:$0xff]
  %v30 = vld [vmem:[%s0 + $0x8] sm:$0xff]
  %v31 = vld [vmem:[%s0 + $0x10] sm:$0xff]
  %v32 = vld [vmem:[%s0 + $0x18] sm:$0xff]
  %v33 = vld [vmem:[%s0 + $0x20] sm:$0xff]
  %v34 = vld [vmem:[%s0 + $0x28] sm:$0xff]
  %v35 = vld [vmem:[%s0 + $0x30] sm:$0xff]
  %v36 = vld [vmem:[%s0 + $0x38] sm:$0xff]
  %v37 = vld [vmem:[%s0 + $0x40] sm:$0xff]
  %v38 = vld [vmem:[%s0 + $0x48] sm:$0xff]
  %v39 = vld [vmem:[%s0 + $0x50] sm:$0xff]
  %v40 = vld [vmem:[%s0 + $0x58] sm:$0xff]
  %v41 = vld [vmem:[%s0 + $0x60] sm:$0xff]
  %v42 = vld [vmem:[%s0 + $0x68] sm:$0xff]
  %v43 = vld [vmem:[%s0 + $0x70] sm:$0xff]
  %v44 = vld [vmem:[%s0 + $0x78] sm:$0xff]
  %v45 = vpack.c.bf16 %v30, %v29
  %v46 = vpack.c.bf16 %v32, %v31
  %v47 = vpack.c.bf16 %v34, %v33
  %v48 = vpack.c.bf16 %v36, %v35
  %v49 = vpack.c.bf16 %v38, %v37
  %v50 = vpack.c.bf16 %v40, %v39
  %v51 = vpack.c.bf16 %v42, %v41
  %v52 = vpack.c.bf16 %v44, %v43
  %v53 = vld [vmem:[%s1] sm:$0xf]
  %v54 = vld [vmem:[%s1 + $0x4] sm:$0xf]
  %v55 = vld [vmem:[%s1 + $0x8] sm:$0xf]
  %v56 = vld [vmem:[%s1 + $0xc] sm:$0xf]
  %v61 = vunpack.c.l.b16 %v53
  %v62 = vunpack.c.l.b16 %v54
  %v63 = vunpack.c.l.b16 %v55
  %v64 = vunpack.c.l.b16 %v56
  %v65 = vpack.c.b16 %v62, %v61
  %v66 = vpack.c.b16 %v64, %v63
  %vm67 = vcmask 130048
  %v69 = vsel %vm67, %v65, 0
  %v72 = vsel %vm67, %v66, 0
  %v75 = vsel %vm67, %v45, 0
  %v78 = vsel %vm67, %v46, 0
  %v81 = vsel %vm67, %v47, 0
  %v84 = vsel %vm67, %v48, 0
  %v87 = vsel %vm67, %v49, 0
  %v90 = vsel %vm67, %v50, 0
  %v93 = vsel %vm67, %v51, 0
  %v96 = vsel %vm67, %v52, 0
  %98 = vmatprep.subr.bf16.mxu0 0
  %99 = vmatpush1.bf16.xpose.msra.mxu0 %v96
  %100 = vmatprep.subr.bf16.mxu0 0
  %101 = vmatpush1.bf16.xpose.msra.mxu0 %v93
  %102 = vmatprep.subr.bf16.mxu0 0
  %103 = vmatpush1.bf16.xpose.msra.mxu0 %v90
  %104 = vmatprep.subr.bf16.mxu0 0
  %105 = vmatpush1.bf16.xpose.msra.mxu0 %v87
  %106 = vmatprep.subr.bf16.mxu0 0
  %107 = vmatpush1.bf16.xpose.msra.mxu0 %v84
  %108 = vmatprep.subr.bf16.mxu0 0
  %109 = vmatpush1.bf16.xpose.msra.mxu0 %v81
  %110 = vmatprep.subr.bf16.mxu0 0
  %111 = vmatpush1.bf16.xpose.msra.mxu0 %v78
  %112 = vmatprep.subr.bf16.mxu0 0
  %113 = vmatpush1.bf16.xpose.msra.mxu0 %v75
  %114 = vmatprep.subr.bf16.mxu0 0
  %115 = vmatpush2.bf16.xpose.msra.mxu0 0
  %116 = vmatprep.subr.bf16.mxu0 0
  %117 = vmatpush2.bf16.xpose.msra.mxu0 0
  %118 = vmatprep.subr.bf16.mxu0 0
  %119 = vmatpush2.bf16.xpose.msra.mxu0 0
  %120 = vmatprep.subr.bf16.mxu0 0
  %121 = vmatpush2.bf16.xpose.msra.mxu0 0
  %122 = vmatprep.subr.bf16.mxu0 0
  %123 = vmatpush2.bf16.xpose.msra.mxu0 0
  %124 = vmatprep.subr.bf16.mxu0 0
  %125 = vmatpush2.bf16.xpose.msra.mxu0 0
  %126 = vmatprep.subr.bf16.mxu0 0
  %127 = vmatpush2.bf16.xpose.msra.mxu0 0
  %128 = vmatprep.subr.bf16.mxu0 0
  %129 = vmatpush2.bf16.xpose.msra.mxu0 0
  %130 = vmatprep.mubr.bf16.mxu0 0
  %131 = vmatmul.mubr.bf16.gmra.mxu0 %v69
  %v132 = vpop.f32.mrf.mxu0
  %v133 = vadd.f32 0.0, %v132
  %v134 = vpop.f32.mrf.mxu0
  %v135 = vpop.f32.mrf.mxu0
  %v136 = vadd.f32 0.0, %v135
  %v137 = vpop.f32.mrf.mxu0
  %138 = vmatprep.mubr.bf16.mxu0 0
  %139 = vmatmul.mubr.bf16.gmra.mxu0 %v72
  %v140 = vpop.f32.mrf.mxu0
  %v141 = vadd.f32 0.0, %v140
  %v142 = vpop.f32.mrf.mxu0
  %v143 = vpop.f32.mrf.mxu0
  %v144 = vadd.f32 0.0, %v143
  %v145 = vpop.f32.mrf.mxu0
  %146 = vdwg.mxu0
  %v147 = vpack.c.bf16 %v136, %v133
  %v148 = vpack.c.bf16 %v144, %v141
  %v149 = vld [vmem:[%s2] sm:$0xf]
  %v150 = vld [vmem:[%s2 + $0x4] sm:$0xf]
  %v151 = vld [vmem:[%s2 + $0x8] sm:$0xf]
  %v152 = vld [vmem:[%s2 + $0xc] sm:$0xf]
  %154 = vset.pattern.permute.xlu0 0
  %155 = vperm.xlu0 %154, %v149
  %v156 = vpop.permute.xlu0 %155
  %v159 = vunpack.c.l.s4 839922192
  %v160 = vunpack.c.0.s8 %v159
  %v161 = vlaneseq
  %v162 = vshrl.u32 %v161, 7
  %v163 = vsub.s32 %v160, %v162
  %v164 = vrot.slane %v156, %v163
  %166 = vset.pattern.permute.xlu0 0
  %167 = vperm.xlu0 %166, %v150
  %v168 = vpop.permute.xlu0 %167
  %v171 = vunpack.c.l.s4 839922192
  %v172 = vunpack.c.0.s8 %v171
  %v173 = vlaneseq
  %v174 = vshrl.u32 %v173, 7
  %v175 = vsub.s32 %v172, %v174
  %v176 = vrot.slane %v168, %v175
  %178 = vset.pattern.permute.xlu0 0
  %179 = vperm.xlu0 %178, %v151
  %v180 = vpop.permute.xlu0 %179
  %v183 = vunpack.c.l.s4 839922192
  %v184 = vunpack.c.0.s8 %v183
  %v185 = vlaneseq
  %v186 = vshrl.u32 %v185, 7
  %v187 = vsub.s32 %v184, %v186
  %v188 = vrot.slane %v180, %v187
  %190 = vset.pattern.permute.xlu0 0
  %191 = vperm.xlu0 %190, %v152
  %v192 = vpop.permute.xlu0 %191
  %v195 = vunpack.c.l.s4 839922192
  %v196 = vunpack.c.0.s8 %v195
  %v197 = vlaneseq
  %v198 = vshrl.u32 %v197, 7
  %v199 = vsub.s32 %v196, %v198
  %v200 = vrot.slane %v192, %v199
  %v205 = vunpack.c.l.b16 %v164
  %v206 = vunpack.c.l.b16 %v176
  %v207 = vunpack.c.l.b16 %v188
  %v208 = vunpack.c.l.b16 %v200
  %v209 = vpack.c.b16 %v206, %v205
  %v210 = vpack.c.b16 %v208, %v207
  %v213 = vadd.bf16 %v147, %v209
  %v214 = vadd.bf16 %v148, %v210
  %v215 = vmax.bf16 %v213, 0
  %v216 = vmax.bf16 %v214, 0
  %v217 = vld [vmem:[%s3] sm:$0xf]
  %v218 = vld [vmem:[%s3 + $0x4] sm:$0xf]
  %v219 = vld [vmem:[%s3 + $0x8] sm:$0xf]
  %v220 = vld [vmem:[%s3 + $0xc] sm:$0xf]
  %v225 = vunpack.c.l.b16 %v217
  %v226 = vunpack.c.l.b16 %v218
  %v227 = vunpack.c.l.b16 %v219
  %v228 = vunpack.c.l.b16 %v220
  %v229 = vpack.c.b16 %v226, %v225
  %v230 = vpack.c.b16 %v228, %v227
  %vm231 = vcmask 261120
  %v233 = vsel %vm231, %v229, 0
  %v236 = vsel %vm231, %v230, 0
  %238 = vmatprep.subr.bf16.mxu0 0
  %239 = vmatpush1.bf16.msra.mxu0 0
  %240 = vmatprep.subr.bf16.mxu0 0
  %241 = vmatpush1.bf16.msra.mxu0 0
  %242 = vmatprep.subr.bf16.mxu0 0
  %243 = vmatpush1.bf16.msra.mxu0 0
  %244 = vmatprep.subr.bf16.mxu0 0
  %245 = vmatpush1.bf16.msra.mxu0 0
  %246 = vmatprep.subr.bf16.mxu0 0
  %247 = vmatpush1.bf16.msra.mxu0 0
  %248 = vmatprep.subr.bf16.mxu0 0
  %249 = vmatpush1.bf16.msra.mxu0 0
  %250 = vmatprep.subr.bf16.mxu0 0
  %251 = vmatpush1.bf16.msra.mxu0 %v216
  %252 = vmatprep.subr.bf16.mxu0 0
  %253 = vmatpush1.bf16.msra.mxu0 %v215
  %254 = vmatprep.subr.bf16.mxu0 0
  %255 = vmatpush2.bf16.msra.mxu0 0
  %256 = vmatprep.subr.bf16.mxu0 0
  %257 = vmatpush2.bf16.msra.mxu0 0
  %258 = vmatprep.subr.bf16.mxu0 0
  %259 = vmatpush2.bf16.msra.mxu0 0
  %260 = vmatprep.subr.bf16.mxu0 0
  %261 = vmatpush2.bf16.msra.mxu0 0
  %262 = vmatprep.subr.bf16.mxu0 0
  %263 = vmatpush2.bf16.msra.mxu0 0
  %264 = vmatprep.subr.bf16.mxu0 0
  %265 = vmatpush2.bf16.msra.mxu0 0
  %266 = vmatprep.subr.bf16.mxu0 0
  %267 = vmatpush2.bf16.msra.mxu0 0
  %268 = vmatprep.subr.bf16.mxu0 0
  %269 = vmatpush2.bf16.msra.mxu0 0
  %270 = vmatprep.mubr.bf16.mxu0 0
  %271 = vmatmul.mubr.bf16.gmra.mxu0 %v233
  %v272 = vpop.f32.mrf.mxu0
  %v273 = vadd.f32 0.0, %v272
  %v274 = vpop.f32.mrf.mxu0
  %v275 = vpop.f32.mrf.mxu0
  %v276 = vadd.f32 0.0, %v275
  %v277 = vpop.f32.mrf.mxu0
  %278 = vmatprep.mubr.bf16.mxu0 0
  %279 = vmatmul.mubr.bf16.gmra.mxu0 %v236
  %v280 = vpop.f32.mrf.mxu0
  %v281 = vadd.f32 0.0, %v280
  %v282 = vpop.f32.mrf.mxu0
  %v283 = vpop.f32.mrf.mxu0
  %v284 = vadd.f32 0.0, %v283
  %v285 = vpop.f32.mrf.mxu0
  %286 = vdwg.mxu0
  %v287 = vpack.c.bf16 %v276, %v273
  %v288 = vpack.c.bf16 %v284, %v281
  %v289 = vld [vmem:[%s4] sm:$0xf]
  %v290 = vld [vmem:[%s4 + $0x4] sm:$0xf]
  %v291 = vld [vmem:[%s4 + $0x8] sm:$0xf]
  %v292 = vld [vmem:[%s4 + $0xc] sm:$0xf]
  %294 = vset.pattern.permute.xlu0 0
  %295 = vperm.xlu0 %294, %v289
  %v296 = vpop.permute.xlu0 %295
  %v299 = vunpack.c.l.s4 839922192
  %v300 = vunpack.c.0.s8 %v299
  %v301 = vlaneseq
  %v302 = vshrl.u32 %v301, 7
  %v303 = vsub.s32 %v300, %v302
  %v304 = vrot.slane %v296, %v303
  %306 = vset.pattern.permute.xlu0 0
  %307 = vperm.xlu0 %306, %v290
  %v308 = vpop.permute.xlu0 %307
  %v311 = vunpack.c.l.s4 839922192
  %v312 = vunpack.c.0.s8 %v311
  %v313 = vlaneseq
  %v314 = vshrl.u32 %v313, 7
  %v315 = vsub.s32 %v312, %v314
  %v316 = vrot.slane %v308, %v315
  %318 = vset.pattern.permute.xlu0 0
  %319 = vperm.xlu0 %318, %v291
  %v320 = vpop.permute.xlu0 %319
  %v323 = vunpack.c.l.s4 839922192
  %v324 = vunpack.c.0.s8 %v323
  %v325 = vlaneseq
  %v326 = vshrl.u32 %v325, 7
  %v327 = vsub.s32 %v324, %v326
  %v328 = vrot.slane %v320, %v327
  %330 = vset.pattern.permute.xlu0 0
  %331 = vperm.xlu0 %330, %v292
  %v332 = vpop.permute.xlu0 %331
  %v335 = vunpack.c.l.s4 839922192
  %v336 = vunpack.c.0.s8 %v335
  %v337 = vlaneseq
  %v338 = vshrl.u32 %v337, 7
  %v339 = vsub.s32 %v336, %v338
  %v340 = vrot.slane %v332, %v339
  %v345 = vunpack.c.l.b16 %v304
  %v346 = vunpack.c.l.b16 %v316
  %v347 = vunpack.c.l.b16 %v328
  %v348 = vunpack.c.l.b16 %v340
  %v349 = vpack.c.b16 %v346, %v345
  %v350 = vpack.c.b16 %v348, %v347
  %v353 = vadd.bf16 %v287, %v349
  %v354 = vadd.bf16 %v288, %v350
  %v355 = vmax.bf16 %v353, 0
  %v356 = vmax.bf16 %v354, 0
  %v357 = vld [vmem:[%s5] sm:$0xf]
  %v358 = vld [vmem:[%s5 + $0x4] sm:$0xf]
  %v359 = vld [vmem:[%s5 + $0x8] sm:$0xf]
  %v360 = vld [vmem:[%s5 + $0xc] sm:$0xf]
  %362 = vset.pattern.permute.xlu0 0
  %363 = vperm.xlu0 %362, %v357
  %v364 = vpop.permute.xlu0 %363
  %v367 = vunpack.c.l.s4 839922192
  %v368 = vunpack.c.0.s8 %v367
  %v369 = vlaneseq
  %v370 = vshrl.u32 %v369, 7
  %v371 = vsub.s32 %v368, %v370
  %v372 = vrot.slane %v364, %v371
  %374 = vset.pattern.permute.xlu0 0
  %375 = vperm.xlu0 %374, %v358
  %v376 = vpop.permute.xlu0 %375
  %v379 = vunpack.c.l.s4 839922192
  %v380 = vunpack.c.0.s8 %v379
  %v381 = vlaneseq
  %v382 = vshrl.u32 %v381, 7
  %v383 = vsub.s32 %v380, %v382
  %v384 = vrot.slane %v376, %v383
  %386 = vset.pattern.permute.xlu0 0
  %387 = vperm.xlu0 %386, %v359
  %v388 = vpop.permute.xlu0 %387
  %v391 = vunpack.c.l.s4 839922192
  %v392 = vunpack.c.0.s8 %v391
  %v393 = vlaneseq
  %v394 = vshrl.u32 %v393, 7
  %v395 = vsub.s32 %v392, %v394
  %v396 = vrot.slane %v388, %v395
  %398 = vset.pattern.permute.xlu0 0
  %399 = vperm.xlu0 %398, %v360
  %v400 = vpop.permute.xlu0 %399
  %v403 = vunpack.c.l.s4 839922192
  %v404 = vunpack.c.0.s8 %v403
  %v405 = vlaneseq
  %v406 = vshrl.u32 %v405, 7
  %v407 = vsub.s32 %v404, %v406
  %v408 = vrot.slane %v400, %v407
  %v413 = vunpack.c.l.b16 %v372
  %v414 = vunpack.c.l.b16 %v384
  %v415 = vunpack.c.l.b16 %v396
  %v416 = vunpack.c.l.b16 %v408
  %v417 = vpack.c.b16 %v414, %v413
  %v418 = vpack.c.b16 %v416, %v415
  %v421 = vmul.bf16 %v355, %v417
  %v422 = vmul.bf16 %v356, %v418
  %v423 = vunpack.c.l.bf16 %v421
  %v424 = vunpack.c.h.bf16 %v421
  %v425 = vunpack.c.l.bf16 %v422
  %v426 = vunpack.c.h.bf16 %v422
  %v427 = vadd.f32 %v423, %v424
  %v428 = vadd.f32 %v427, %v425
  %v429 = vadd.f32 %v428, %v426
  %v430 = vrot.slane %v429, 4
  %v431 = vadd.f32 %v429, %v430
  %v432 = vrot.slane %v431, 2
  %v433 = vadd.f32 %v431, %v432
  %v434 = vrot.slane %v433, 1
  %v435 = vadd.f32 %v433, %v434
  %v436 = vld [vmem:[#allocation2] sm:$0x1]
  %438 = vset.pattern.permute.xlu0 0
  %439 = vperm.xlu0 %438, %v436
  %v440 = vpop.permute.xlu0 %439
  %v442 = vlaneseq
  %v443 = vshrl.u32 %v442, 7
  %v444 = vsub.s32 0, %v443
  %v445 = vrot.slane %v440, %v444
  %v446 = vadd.f32 %v435, %v445
  %v447 = vsub.f32 0.0, %v446
  %v448 = vmul.f32 %v447, 1.442695
  %v449 = vpow.pop %v448
  %v450 = vadd.f32 %v449, 1.0
  %v451 = vrcp.pop %v450
  %452 = vst [vmem:[%s7] sm:$0x1] %v451
  // Predicated region
  $region30: #{net_forward.1} parent=0 // pred_check
    _
  $region31: #{net_forward.1} parent=0 // pred_check_branch
    %454 = sbr.rel (0) target = $region33
  $region32: #{net_forward.1} parent=0 // pred_region
    _
  $region33: #{net_forward.1} parent=0 // pred_fallthru
    _
  // Predicated region
  $region34: #{net_forward.1} parent=0 // pred_check
    _
  $region35: #{net_forward.1} parent=0 // pred_check_branch
    %456 = sbr.rel (0) target = $region37
  $region36: #{net_forward.1} parent=0 // pred_region
    _
  $region37: #{net_forward.1} parent=0 // pred_fallthru
    _

</llo_original>
